<compile_context>
chip_gen: v5e
topology: v5e:2x2
jax: 0.10.0
libtpu: 0.0.40
codegen_flags: <defaults>
</compile_context>

<pallas_src>
import math

import jax
import jax.numpy as jnp
from jax.experimental import pallas as pl
from jax.experimental.pallas import tpu as pltpu


def _layernorm(v, g, b, eps=1e-5):
    # f32 elementwise math (VPU/EUP), matches nn.LayerNorm.
    mu = jnp.mean(v, axis=-1, keepdims=True)
    var = jnp.mean((v - mu) ** 2, axis=-1, keepdims=True)
    return (v - mu) * jax.lax.rsqrt(var + eps) * g + b


def encoder_layer_kernel(
    x_ref,
    wqkv_ref, bqkv_ref, wo_ref, bo_ref,
    w1_ref, c1_ref, w2_ref, c2_ref,
    g1_ref, be1_ref, g2_ref, be2_ref,
    o_ref,
):
    BB, L, C = x_ref.shape
    bf16 = jnp.bfloat16

    # Load the bf16 block, promote to f32 (residual / LN path stays f32),
    # flatten tokens so the matmuls see M = BB*L rows.
    x = x_ref[...].astype(jnp.float32)           # (BB, L, C)
    x2 = x.reshape(BB * L, C)                    # (BB*L, C) f32
    x2b = x2.astype(bf16)

    # ---- fused Q|K|V projection (one MXU pass, f32 accumulation) ----------
    qkv = jnp.dot(x2b, wqkv_ref[...], preferred_element_type=jnp.float32)
    qkv = qkv + bqkv_ref[...]                    # (BB*L, 3C) f32
    q = qkv[:, :C].reshape(BB, L, C).astype(bf16)        # 1/sqrt(C) folded in
    k = qkv[:, C:2 * C].reshape(BB, L, C).astype(bf16)
    v = qkv[:, 2 * C:].reshape(BB, L, C).astype(bf16)

    # ---- scaled-dot-product attention (f32 softmax) ------------------------
    s = jnp.einsum("bld,bmd->blm", q, k,
                   preferred_element_type=jnp.float32)   # (BB, L, L)
    s = s - jnp.max(s, axis=-1, keepdims=True)
    p = jnp.exp(s)
    inv = pl.reciprocal(jnp.sum(p, axis=-1, keepdims=True), approx=True)
    ctx = jnp.einsum("blm,bmd->bld", p.astype(bf16), v,
                     preferred_element_type=jnp.float32) * inv   # (BB, L, C)
    ctx2 = ctx.reshape(BB * L, C).astype(bf16)
    attn = jnp.dot(ctx2, wo_ref[...],
                   preferred_element_type=jnp.float32) + bo_ref[...]

    # ---- residual + norm1 (dropout = identity in eval mode) ---------------
    x1 = _layernorm(x2 + attn, g1_ref[...], be1_ref[...])        # (BB*L, C)

    # ---- position-wise FFN: k=1 convs == per-token linears ----------------
    y = jnp.dot(x1.astype(bf16), w1_ref[...],
                preferred_element_type=jnp.float32) + c1_ref[...]
    y = jnp.maximum(y, 0.0)                                      # relu
    y = jnp.dot(y.astype(bf16), w2_ref[...],
                preferred_element_type=jnp.float32) + c2_ref[...]

    # ---- residual + norm2 ---------------------------------------------------
    out = _layernorm(x1 + y, g2_ref[...], be2_ref[...])
    o_ref[...] = out.reshape(BB, L, C).astype(o_ref.dtype)


def encoder_layer_pallas(x, params):
    """x: (N, L, C) float32.  params: dict of f32 weights (see _make_params)."""
    N, L, C = x.shape
    scale = 1.0 / math.sqrt(C)
    bf16 = jnp.bfloat16

    # Fold the attention scale into the Q projection; fuse Q|K|V weights.
    wqkv = jnp.concatenate(
        [params["wq"] * scale, params["wk"], params["wv"]], axis=1)
    bqkv = jnp.concatenate(
        [params["bq"] * scale, params["bk"], params["bv"]], axis=1)

    # bf16 for matmul weights (MXU inputs); biases / LN params stay f32.
    weights = [
        wqkv.astype(bf16), bqkv.astype(jnp.float32),
        params["wo"].astype(bf16), params["bo"].astype(jnp.float32),
        params["w1"].astype(bf16), params["c1"].astype(jnp.float32),
        params["w2"].astype(bf16), params["c2"].astype(jnp.float32),
        params["g1"], params["be1"], params["g2"], params["be2"],
    ]

    # Batch-block tiling: several batch elements per grid step.
    BB = N if N <= 8 else 8
    while N % BB:
        BB -= 1
    grid = (N // BB,)

    def wspec(shape):
        n = len(shape)
        return pl.BlockSpec(shape, lambda i, _n=n: (0,) * _n)

    in_specs = [pl.BlockSpec((BB, L, C), lambda i: (i, 0, 0))]
    in_specs += [wspec(w.shape) for w in weights]
    out_spec = pl.BlockSpec((BB, L, C), lambda i: (i, 0, 0))

    return pl.pallas_call(
        encoder_layer_kernel,
        out_shape=jax.ShapeDtypeStruct((N, L, C), jnp.float32),
        grid=grid,
        in_specs=in_specs,
        out_specs=out_spec,
        compiler_params=pltpu.CompilerParams(
            dimension_semantics=("parallel",),
            vmem_limit_bytes=32 * 1024 * 1024),
    )(x.astype(bf16), *weights)


def _make_params(key, d_model, d_ff):
    ks = jax.random.split(key, 8)
    s_attn = 1.0 / math.sqrt(d_model)
    s_ff1 = 1.0 / math.sqrt(d_model)
    s_ff2 = 1.0 / math.sqrt(d_ff)
    return {
        # attention projections (weights as (in, out) for x @ W)
        "wq": jax.random.normal(ks[0], (d_model, d_model), jnp.float32) * s_attn,
        "bq": jnp.zeros((1, d_model), jnp.float32),
        "wk": jax.random.normal(ks[1], (d_model, d_model), jnp.float32) * s_attn,
        "bk": jnp.zeros((1, d_model), jnp.float32),
        "wv": jax.random.normal(ks[2], (d_model, d_model), jnp.float32) * s_attn,
        "bv": jnp.zeros((1, d_model), jnp.float32),
        "wo": jax.random.normal(ks[3], (d_model, d_model), jnp.float32) * s_attn,
        "bo": jnp.zeros((1, d_model), jnp.float32),
        # conv1 (d_model -> d_ff, k=1) as matmul weight + bias
        "w1": jax.random.normal(ks[4], (d_model, d_ff), jnp.float32) * s_ff1,
        "c1": jax.random.normal(ks[5], (1, d_ff), jnp.float32) * 0.01,
        # conv2 (d_ff -> d_model, k=1)
        "w2": jax.random.normal(ks[6], (d_ff, d_model), jnp.float32) * s_ff2,
        "c2": jax.random.normal(ks[7], (1, d_model), jnp.float32) * 0.01,
        # LayerNorm affine params (PyTorch default init)
        "g1": jnp.ones((1, d_model), jnp.float32),
        "be1": jnp.zeros((1, d_model), jnp.float32),
        "g2": jnp.ones((1, d_model), jnp.float32),
        "be2": jnp.zeros((1, d_model), jnp.float32),
    }


def _reference(x, p):
    """Pure-JAX f32 reference of the same forward pass (eval mode)."""
    def ln(v, g, b, eps=1e-5):
        mu = jnp.mean(v, axis=-1, keepdims=True)
        var = jnp.mean((v - mu) ** 2, axis=-1, keepdims=True)
        return (v - mu) / jnp.sqrt(var + eps) * g + b

    C = x.shape[-1]
    q = x @ p["wq"] + p["bq"]
    k = x @ p["wk"] + p["bk"]
    v = x @ p["wv"] + p["bv"]
    s = jnp.einsum("nld,nmd->nlm", q, k) / math.sqrt(C)
    a = jax.nn.softmax(s, axis=-1)
    attn = jnp.einsum("nlm,nmd->nld", a, v) @ p["wo"] + p["bo"]
    x1 = ln(x + attn, p["g1"], p["be1"])
    y = jnp.maximum(x1 @ p["w1"] + p["c1"], 0.0)
    y = y @ p["w2"] + p["c2"]
    return ln(x1 + y, p["g2"], p["be2"])


if __name__ == "__main__":
    N, L, d_model = 2, 8, 32
    d_ff = 4 * d_model  # PyTorch default d_ff = 4 * d_model

    key = jax.random.PRNGKey(0)
    kx, kp = jax.random.split(key)
    x = jax.random.normal(kx, (N, L, d_model), jnp.float32)
    params = _make_params(kp, d_model, d_ff)

    out = jax.block_until_ready(encoder_layer_pallas(x, params))

    # Reference in f32, with x / matmul weights rounded through bf16 to mirror
    # the kernel's MXU input precision (accumulation is f32 in both).
    rt = lambda a: a.astype(jnp.bfloat16).astype(jnp.float32)
    qparams = {k: (rt(v) if k in ("wq", "wk", "wv", "wo", "w1", "w2") else v)
               for k, v in params.items()}
    ref = _reference(rt(x), qparams)

    assert out.shape == (N, L, d_model)
    err = float(jnp.max(jnp.abs(out - ref)))
    assert jnp.allclose(out, ref, atol=5e-2, rtol=5e-2), f"max abs err {err}"

    print("KERNEL_OK")
</pallas_src>

<mosaic_0001>
module attributes {stable_mosaic.version = 11 : i64} {
  func.func @encoder_layer_kernel(%arg0: i32, %arg1: memref<2x8x32xbf16, #tpu.memory_space<vmem>>, %arg2: memref<32x96xbf16, #tpu.memory_space<vmem>>, %arg3: memref<1x96xf32, #tpu.memory_space<vmem>>, %arg4: memref<32x32xbf16, #tpu.memory_space<vmem>>, %arg5: memref<1x32xf32, #tpu.memory_space<vmem>>, %arg6: memref<32x128xbf16, #tpu.memory_space<vmem>>, %arg7: memref<1x128xf32, #tpu.memory_space<vmem>>, %arg8: memref<128x32xbf16, #tpu.memory_space<vmem>>, %arg9: memref<1x32xf32, #tpu.memory_space<vmem>>, %arg10: memref<1x32xf32, #tpu.memory_space<vmem>>, %arg11: memref<1x32xf32, #tpu.memory_space<vmem>>, %arg12: memref<1x32xf32, #tpu.memory_space<vmem>>, %arg13: memref<1x32xf32, #tpu.memory_space<vmem>>, %arg14: memref<2x8x32xf32, #tpu.memory_space<vmem>>) attributes {dimension_semantics = [#tpu.dimension_semantics<parallel>], iteration_bounds = array<i64: 1>, scalar_prefetch = 0 : i64, scratch_operands = 0 : i64, tpu.core_type = #tpu.core_type<tc>, window_params = [{transform_indices = @transform_0, window_bounds = array<i64: 2, 8, 32>}, {pipeline_mode = #tpu.pipeline_mode<synchronous>, transform_indices = @transform_1, window_bounds = array<i64: 32, 96>}, {pipeline_mode = #tpu.pipeline_mode<synchronous>, transform_indices = @transform_2, window_bounds = array<i64: 1, 96>}, {pipeline_mode = #tpu.pipeline_mode<synchronous>, transform_indices = @transform_3, window_bounds = array<i64: 32, 32>}, {pipeline_mode = #tpu.pipeline_mode<synchronous>, transform_indices = @transform_4, window_bounds = array<i64: 1, 32>}, {pipeline_mode = #tpu.pipeline_mode<synchronous>, transform_indices = @transform_5, window_bounds = array<i64: 32, 128>}, {pipeline_mode = #tpu.pipeline_mode<synchronous>, transform_indices = @transform_6, window_bounds = array<i64: 1, 128>}, {pipeline_mode = #tpu.pipeline_mode<synchronous>, transform_indices = @transform_7, window_bounds = array<i64: 128, 32>}, {pipeline_mode = #tpu.pipeline_mode<synchronous>, transform_indices = @transform_8, window_bounds = array<i64: 1, 32>}, {pipeline_mode = #tpu.pipeline_mode<synchronous>, transform_indices = @transform_9, window_bounds = array<i64: 1, 32>}, {pipeline_mode = #tpu.pipeline_mode<synchronous>, transform_indices = @transform_10, window_bounds = array<i64: 1, 32>}, {pipeline_mode = #tpu.pipeline_mode<synchronous>, transform_indices = @transform_11, window_bounds = array<i64: 1, 32>}, {pipeline_mode = #tpu.pipeline_mode<synchronous>, transform_indices = @transform_12, window_bounds = array<i64: 1, 32>}, {transform_indices = @transform_13, window_bounds = array<i64: 2, 8, 32>}]} {
    %c0 = arith.constant 0 : index
    %c0_0 = arith.constant 0 : index
    %c0_1 = arith.constant 0 : index
    %0 = vector.load %arg1[%c0, %c0_0, %c0_1] : memref<2x8x32xbf16, #tpu.memory_space<vmem>>, vector<2x8x32xbf16>
    %1 = arith.extf %0 : vector<2x8x32xbf16> to vector<2x8x32xf32>
    %2 = vector.shape_cast %1 : vector<2x8x32xf32> to vector<16x32xf32>
    %3 = arith.truncf %2 : vector<16x32xf32> to vector<16x32xbf16>
    %c0_2 = arith.constant 0 : index
    %c0_3 = arith.constant 0 : index
    %4 = vector.load %arg2[%c0_2, %c0_3] : memref<32x96xbf16, #tpu.memory_space<vmem>>, vector<32x96xbf16>
    %cst = arith.constant dense<0.000000e+00> : vector<16x96xf32>
    %5 = tpu.matmul %3, %4, %cst {dimension_numbers = #tpu.dot_dimension_numbers<[1], [0], [0], [1], [0, 0, 1, 1], [], []>} : vector<16x32xbf16>, vector<32x96xbf16>, vector<16x96xf32> -> vector<16x96xf32>
    %c0_4 = arith.constant 0 : index
    %c0_5 = arith.constant 0 : index
    %6 = vector.load %arg3[%c0_4, %c0_5] : memref<1x96xf32, #tpu.memory_space<vmem>>, vector<1x96xf32>
    %7 = vector.broadcast %6 : vector<1x96xf32> to vector<16x96xf32>
    %8 = arith.addf %5, %7 : vector<16x96xf32>
    %9 = vector.extract_strided_slice %8 {offsets = [0, 0], sizes = [16, 32], strides = [1, 1]} : vector<16x96xf32> to vector<16x32xf32>
    %10 = vector.shape_cast %9 : vector<16x32xf32> to vector<2x8x32xf32>
    %11 = arith.truncf %10 : vector<2x8x32xf32> to vector<2x8x32xbf16>
    %12 = vector.extract_strided_slice %8 {offsets = [0, 32], sizes = [16, 32], strides = [1, 1]} : vector<16x96xf32> to vector<16x32xf32>
    %13 = vector.shape_cast %12 : vector<16x32xf32> to vector<2x8x32xf32>
    %14 = arith.truncf %13 : vector<2x8x32xf32> to vector<2x8x32xbf16>
    %15 = vector.extract_strided_slice %8 {offsets = [0, 64], sizes = [16, 32], strides = [1, 1]} : vector<16x96xf32> to vector<16x32xf32>
    %16 = vector.shape_cast %15 : vector<16x32xf32> to vector<2x8x32xf32>
    %17 = arith.truncf %16 : vector<2x8x32xf32> to vector<2x8x32xbf16>
    "tpu.trace_start"() <{level = 10 : i32, message = "bld,bmd->blm"}> : () -> ()
    %cst_6 = arith.constant dense<0.000000e+00> : vector<2x8x8xf32>
    %18 = tpu.matmul %11, %14, %cst_6 {dimension_numbers = #tpu.dot_dimension_numbers<[2], [2], [1], [1], [0, 0, 0, 1, 1, 1], [0], [0]>} : vector<2x8x32xbf16>, vector<2x8x32xbf16>, vector<2x8x8xf32> -> vector<2x8x8xf32>
    "tpu.trace_stop"() : () -> ()
    %cst_7 = arith.constant dense<0xFF800000> : vector<2x8xf32>
    %19 = vector.multi_reduction <maximumf>, %18, %cst_7 [2] : vector<2x8x8xf32> to vector<2x8xf32>
    %20 = vector.shape_cast %19 : vector<2x8xf32> to vector<2x8x1xf32>
    %21 = vector.broadcast %20 : vector<2x8x1xf32> to vector<2x8x8xf32>
    %22 = arith.subf %18, %21 : vector<2x8x8xf32>
    %23 = math.exp %22 : vector<2x8x8xf32>
    %cst_8 = arith.constant dense<0.000000e+00> : vector<2x8xf32>
    %24 = vector.multi_reduction <add>, %23, %cst_8 [2] : vector<2x8x8xf32> to vector<2x8xf32>
    %25 = vector.shape_cast %24 : vector<2x8xf32> to vector<2x8x1xf32>
    %26 = tpu.reciprocal %25 {approx = true} : vector<2x8x1xf32> -> vector<2x8x1xf32>
    %27 = arith.truncf %23 : vector<2x8x8xf32> to vector<2x8x8xbf16>
    "tpu.trace_start"() <{level = 10 : i32, message = "blm,bmd->bld"}> : () -> ()
    %cst_9 = arith.constant dense<0.000000e+00> : vector<2x8x32xf32>
    %28 = tpu.matmul %27, %17, %cst_9 {dimension_numbers = #tpu.dot_dimension_numbers<[2], [1], [1], [2], [0, 0, 0, 1, 1, 2], [0], [0]>} : vector<2x8x8xbf16>, vector<2x8x32xbf16>, vector<2x8x32xf32> -> vector<2x8x32xf32>
    "tpu.trace_stop"() : () -> ()
    %29 = vector.broadcast %26 : vector<2x8x1xf32> to vector<2x8x32xf32>
    %30 = arith.mulf %28, %29 : vector<2x8x32xf32>
    %31 = vector.shape_cast %30 : vector<2x8x32xf32> to vector<16x32xf32>
    %32 = arith.truncf %31 : vector<16x32xf32> to vector<16x32xbf16>
    %c0_10 = arith.constant 0 : index
    %c0_11 = arith.constant 0 : index
    %33 = vector.load %arg4[%c0_10, %c0_11] : memref<32x32xbf16, #tpu.memory_space<vmem>>, vector<32x32xbf16>
    %cst_12 = arith.constant dense<0.000000e+00> : vector<16x32xf32>
    %34 = tpu.matmul %32, %33, %cst_12 {dimension_numbers = #tpu.dot_dimension_numbers<[1], [0], [0], [1], [0, 0, 1, 1], [], []>} : vector<16x32xbf16>, vector<32x32xbf16>, vector<16x32xf32> -> vector<16x32xf32>
    %c0_13 = arith.constant 0 : index
    %c0_14 = arith.constant 0 : index
    %35 = vector.load %arg5[%c0_13, %c0_14] : memref<1x32xf32, #tpu.memory_space<vmem>>, vector<1x32xf32>
    %36 = vector.broadcast %35 : vector<1x32xf32> to vector<16x32xf32>
    %37 = arith.addf %34, %36 : vector<16x32xf32>
    %38 = arith.addf %2, %37 : vector<16x32xf32>
    %c0_15 = arith.constant 0 : index
    %c0_16 = arith.constant 0 : index
    %39 = vector.load %arg10[%c0_15, %c0_16] : memref<1x32xf32, #tpu.memory_space<vmem>>, vector<1x32xf32>
    %c0_17 = arith.constant 0 : index
    %c0_18 = arith.constant 0 : index
    %40 = vector.load %arg11[%c0_17, %c0_18] : memref<1x32xf32, #tpu.memory_space<vmem>>, vector<1x32xf32>
    %cst_19 = arith.constant dense<0.000000e+00> : vector<16xf32>
    %41 = vector.multi_reduction <add>, %38, %cst_19 [1] : vector<16x32xf32> to vector<16xf32>
    %42 = vector.shape_cast %41 : vector<16xf32> to vector<16x1xf32>
    %cst_20 = arith.constant 3.200000e+01 : f32
    %43 = vector.broadcast %cst_20 : f32 to vector<16x1xf32>
    %44 = arith.divf %42, %43 : vector<16x1xf32>
    %45 = vector.broadcast %44 : vector<16x1xf32> to vector<16x32xf32>
    %46 = arith.subf %38, %45 : vector<16x32xf32>
    %47 = arith.mulf %46, %46 : vector<16x32xf32>
    %cst_21 = arith.constant dense<0.000000e+00> : vector<16xf32>
    %48 = vector.multi_reduction <add>, %47, %cst_21 [1] : vector<16x32xf32> to vector<16xf32>
    %49 = vector.shape_cast %48 : vector<16xf32> to vector<16x1xf32>
    %cst_22 = arith.constant 3.200000e+01 : f32
    %50 = vector.broadcast %cst_22 : f32 to vector<16x1xf32>
    %51 = arith.divf %49, %50 : vector<16x1xf32>
    %52 = vector.broadcast %44 : vector<16x1xf32> to vector<16x32xf32>
    %53 = arith.subf %38, %52 : vector<16x32xf32>
    %cst_23 = arith.constant 9.99999974E-6 : f32
    %54 = vector.broadcast %cst_23 : f32 to vector<16x1xf32>
    %55 = arith.addf %51, %54 : vector<16x1xf32>
    %56 = math.rsqrt %55 : vector<16x1xf32>
    %57 = vector.broadcast %56 : vector<16x1xf32> to vector<16x32xf32>
    %58 = arith.mulf %53, %57 : vector<16x32xf32>
    %59 = vector.broadcast %39 : vector<1x32xf32> to vector<16x32xf32>
    %60 = arith.mulf %58, %59 : vector<16x32xf32>
    %61 = vector.broadcast %40 : vector<1x32xf32> to vector<16x32xf32>
    %62 = arith.addf %60, %61 : vector<16x32xf32>
    %63 = arith.truncf %62 : vector<16x32xf32> to vector<16x32xbf16>
    %c0_24 = arith.constant 0 : index
    %c0_25 = arith.constant 0 : index
    %64 = vector.load %arg6[%c0_24, %c0_25] : memref<32x128xbf16, #tpu.memory_space<vmem>>, vector<32x128xbf16>
    %cst_26 = arith.constant dense<0.000000e+00> : vector<16x128xf32>
    %65 = tpu.matmul %63, %64, %cst_26 {dimension_numbers = #tpu.dot_dimension_numbers<[1], [0], [0], [1], [0, 0, 1, 1], [], []>} : vector<16x32xbf16>, vector<32x128xbf16>, vector<16x128xf32> -> vector<16x128xf32>
    %c0_27 = arith.constant 0 : index
    %c0_28 = arith.constant 0 : index
    %66 = vector.load %arg7[%c0_27, %c0_28] : memref<1x128xf32, #tpu.memory_space<vmem>>, vector<1x128xf32>
    %67 = vector.broadcast %66 : vector<1x128xf32> to vector<16x128xf32>
    %68 = arith.addf %65, %67 : vector<16x128xf32>
    %cst_29 = arith.constant 0.000000e+00 : f32
    %69 = vector.broadcast %cst_29 : f32 to vector<16x128xf32>
    %70 = arith.maximumf %68, %69 : vector<16x128xf32>
    %71 = arith.truncf %70 : vector<16x128xf32> to vector<16x128xbf16>
    %c0_30 = arith.constant 0 : index
    %c0_31 = arith.constant 0 : index
    %72 = vector.load %arg8[%c0_30, %c0_31] : memref<128x32xbf16, #tpu.memory_space<vmem>>, vector<128x32xbf16>
    %cst_32 = arith.constant dense<0.000000e+00> : vector<16x32xf32>
    %73 = tpu.matmul %71, %72, %cst_32 {dimension_numbers = #tpu.dot_dimension_numbers<[1], [0], [0], [1], [0, 0, 1, 1], [], []>} : vector<16x128xbf16>, vector<128x32xbf16>, vector<16x32xf32> -> vector<16x32xf32>
    %c0_33 = arith.constant 0 : index
    %c0_34 = arith.constant 0 : index
    %74 = vector.load %arg9[%c0_33, %c0_34] : memref<1x32xf32, #tpu.memory_space<vmem>>, vector<1x32xf32>
    %75 = vector.broadcast %74 : vector<1x32xf32> to vector<16x32xf32>
    %76 = arith.addf %73, %75 : vector<16x32xf32>
    %77 = arith.addf %62, %76 : vector<16x32xf32>
    %c0_35 = arith.constant 0 : index
    %c0_36 = arith.constant 0 : index
    %78 = vector.load %arg12[%c0_35, %c0_36] : memref<1x32xf32, #tpu.memory_space<vmem>>, vector<1x32xf32>
    %c0_37 = arith.constant 0 : index
    %c0_38 = arith.constant 0 : index
    %79 = vector.load %arg13[%c0_37, %c0_38] : memref<1x32xf32, #tpu.memory_space<vmem>>, vector<1x32xf32>
    %cst_39 = arith.constant dense<0.000000e+00> : vector<16xf32>
    %80 = vector.multi_reduction <add>, %77, %cst_39 [1] : vector<16x32xf32> to vector<16xf32>
    %81 = vector.shape_cast %80 : vector<16xf32> to vector<16x1xf32>
    %cst_40 = arith.constant 3.200000e+01 : f32
    %82 = vector.broadcast %cst_40 : f32 to vector<16x1xf32>
    %83 = arith.divf %81, %82 : vector<16x1xf32>
    %84 = vector.broadcast %83 : vector<16x1xf32> to vector<16x32xf32>
    %85 = arith.subf %77, %84 : vector<16x32xf32>
    %86 = arith.mulf %85, %85 : vector<16x32xf32>
    %cst_41 = arith.constant dense<0.000000e+00> : vector<16xf32>
    %87 = vector.multi_reduction <add>, %86, %cst_41 [1] : vector<16x32xf32> to vector<16xf32>
    %88 = vector.shape_cast %87 : vector<16xf32> to vector<16x1xf32>
    %cst_42 = arith.constant 3.200000e+01 : f32
    %89 = vector.broadcast %cst_42 : f32 to vector<16x1xf32>
    %90 = arith.divf %88, %89 : vector<16x1xf32>
    %91 = vector.broadcast %83 : vector<16x1xf32> to vector<16x32xf32>
    %92 = arith.subf %77, %91 : vector<16x32xf32>
    %cst_43 = arith.constant 9.99999974E-6 : f32
    %93 = vector.broadcast %cst_43 : f32 to vector<16x1xf32>
    %94 = arith.addf %90, %93 : vector<16x1xf32>
    %95 = math.rsqrt %94 : vector<16x1xf32>
    %96 = vector.broadcast %95 : vector<16x1xf32> to vector<16x32xf32>
    %97 = arith.mulf %92, %96 : vector<16x32xf32>
    %98 = vector.broadcast %78 : vector<1x32xf32> to vector<16x32xf32>
    %99 = arith.mulf %97, %98 : vector<16x32xf32>
    %100 = vector.broadcast %79 : vector<1x32xf32> to vector<16x32xf32>
    %101 = arith.addf %99, %100 : vector<16x32xf32>
    %102 = vector.shape_cast %101 : vector<16x32xf32> to vector<2x8x32xf32>
    %c0_44 = arith.constant 0 : index
    %c0_45 = arith.constant 0 : index
    %c0_46 = arith.constant 0 : index
    %103 = vector.load %arg14[%c0_44, %c0_45, %c0_46] : memref<2x8x32xf32, #tpu.memory_space<vmem>>, vector<2x8x32xf32>
    tpu.vector_store %arg14[%c0_44, %c0_45, %c0_46], %102 {strides = array<i32>} : memref<2x8x32xf32, #tpu.memory_space<vmem>>, vector<2x8x32xf32>,
    return
  }
  func.func @transform_0(%arg0: i32) -> (i32, i32, i32) {
    %c0_i32 = arith.constant 0 : i32
    %c0_i32_0 = arith.constant 0 : i32
    %c0_i32_1 = arith.constant 0 : i32
    return %arg0, %c0_i32, %c0_i32_0 : i32, i32, i32
  }
  func.func @transform_1(%arg0: i32) -> (i32, i32) {
    %c0_i32 = arith.constant 0 : i32
    %c0_i32_0 = arith.constant 0 : i32
    %c0_i32_1 = arith.constant 0 : i32
    return %c0_i32, %c0_i32_0 : i32, i32
  }
  func.func @transform_2(%arg0: i32) -> (i32, i32) {
    %c0_i32 = arith.constant 0 : i32
    %c0_i32_0 = arith.constant 0 : i32
    %c0_i32_1 = arith.constant 0 : i32
    return %c0_i32, %c0_i32_0 : i32, i32
  }
  func.func @transform_3(%arg0: i32) -> (i32, i32) {
    %c0_i32 = arith.constant 0 : i32
    %c0_i32_0 = arith.constant 0 : i32
    %c0_i32_1 = arith.constant 0 : i32
    return %c0_i32, %c0_i32_0 : i32, i32
  }
  func.func @transform_4(%arg0: i32) -> (i32, i32) {
    %c0_i32 = arith.constant 0 : i32
    %c0_i32_0 = arith.constant 0 : i32
    %c0_i32_1 = arith.constant 0 : i32
    return %c0_i32, %c0_i32_0 : i32, i32
  }
  func.func @transform_5(%arg0: i32) -> (i32, i32) {
    %c0_i32 = arith.constant 0 : i32
    %c0_i32_0 = arith.constant 0 : i32
    %c0_i32_1 = arith.constant 0 : i32
    return %c0_i32, %c0_i32_0 : i32, i32
  }
  func.func @transform_6(%arg0: i32) -> (i32, i32) {
    %c0_i32 = arith.constant 0 : i32
    %c0_i32_0 = arith.constant 0 : i32
    %c0_i32_1 = arith.constant 0 : i32
    return %c0_i32, %c0_i32_0 : i32, i32
  }
  func.func @transform_7(%arg0: i32) -> (i32, i32) {
    %c0_i32 = arith.constant 0 : i32
    %c0_i32_0 = arith.constant 0 : i32
    %c0_i32_1 = arith.constant 0 : i32
    return %c0_i32, %c0_i32_0 : i32, i32
  }
  func.func @transform_8(%arg0: i32) -> (i32, i32) {
    %c0_i32 = arith.constant 0 : i32
    %c0_i32_0 = arith.constant 0 : i32
    %c0_i32_1 = arith.constant 0 : i32
    return %c0_i32, %c0_i32_0 : i32, i32
  }
  func.func @transform_9(%arg0: i32) -> (i32, i32) {
    %c0_i32 = arith.constant 0 : i32
    %c0_i32_0 = arith.constant 0 : i32
    %c0_i32_1 = arith.constant 0 : i32
    return %c0_i32, %c0_i32_0 : i32, i32
  }
  func.func @transform_10(%arg0: i32) -> (i32, i32) {
    %c0_i32 = arith.constant 0 : i32
    %c0_i32_0 = arith.constant 0 : i32
    %c0_i32_1 = arith.constant 0 : i32
    return %c0_i32, %c0_i32_0 : i32, i32
  }
  func.func @transform_11(%arg0: i32) -> (i32, i32) {
    %c0_i32 = arith.constant 0 : i32
    %c0_i32_0 = arith.constant 0 : i32
    %c0_i32_1 = arith.constant 0 : i32
    return %c0_i32, %c0_i32_0 : i32, i32
  }
  func.func @transform_12(%arg0: i32) -> (i32, i32) {
    %c0_i32 = arith.constant 0 : i32
    %c0_i32_0 = arith.constant 0 : i32
    %c0_i32_1 = arith.constant 0 : i32
    return %c0_i32, %c0_i32_0 : i32, i32
  }
  func.func @transform_13(%arg0: i32) -> (i32, i32, i32) {
    %c0_i32 = arith.constant 0 : i32
    %c0_i32_0 = arith.constant 0 : i32
    %c0_i32_1 = arith.constant 0 : i32
    return %arg0, %c0_i32, %c0_i32_0 : i32, i32, i32
  }
}

</mosaic_0001>

<llo_original>
// kernel: tpu_custom_call.1
$region0: #{tpu_custom_call.1}
  #allocation0 [shape = 'u32[]', space=smem, size = 0x4, offset = 0x4, fixed_abs, tag = 'smem constant byte address 0x4 - core index']
  #allocation1 [shape = 'u32[72,128]{1,0:T(1,128)}', space=vmem, size = 0x9000, scoped, tag = 'internal scratch']
  %s0 = inlined_call_operand.vmem [shape: bf16[2,8,32], index: 0, kind: input, shape index: {}]
  %s1 = inlined_call_operand.vmem [shape: bf16[32,96], index: 1, kind: input, shape index: {}]
  %s2 = inlined_call_operand.vmem [shape: f32[1,96], index: 2, kind: input, shape index: {}]
  %s3 = inlined_call_operand.vmem [shape: bf16[32,32], index: 3, kind: input, shape index: {}]
  %s4 = inlined_call_operand.vmem [shape: f32[1,32], index: 4, kind: input, shape index: {}]
  %s5 = inlined_call_operand.vmem [shape: bf16[32,128], index: 5, kind: input, shape index: {}]
  %s6 = inlined_call_operand.vmem [shape: f32[1,128], index: 6, kind: input, shape index: {}]
  %s7 = inlined_call_operand.vmem [shape: bf16[128,32], index: 7, kind: input, shape index: {}]
  %s8 = inlined_call_operand.vmem [shape: f32[1,32], index: 8, kind: input, shape index: {}]
  %s9 = inlined_call_operand.vmem [shape: f32[1,32], index: 9, kind: input, shape index: {}]
  %s10 = inlined_call_operand.vmem [shape: f32[1,32], index: 10, kind: input, shape index: {}]
  %s11 = inlined_call_operand.vmem [shape: f32[1,32], index: 11, kind: input, shape index: {}]
  %s12 = inlined_call_operand.vmem [shape: f32[1,32], index: 12, kind: input, shape index: {}]
  %s13 = inlined_call_operand.hbm [shape: f32[2,8,32], index: 13, kind: output, shape index: {}]
  %s14 = sld [smem:[#allocation0]]
  $region62: #{tpu_custom_call.1} parent=0
    _
  %s16 = ssub.s32 1, %s14
  %s17 = scalar_select 0, %s16, %s14
  $region1: #{tpu_custom_call.1} parent=0
    #allocation2 [shape = 'u8[8192]{0}', space=vmem, size = 0x2000, scoped, tag = 'output window, operand 0, single buffered']
    #allocation3 [shape = 's32[1]{0}', space=sflag, size = 0x4, scoped, tag = 'scoped memory for tpu_custom_call.1']
    %18 = vsyncpa [#allocation3], 0
    // Predicated region
    $region2: #{tpu_custom_call.1} parent=1 // pred_check
      _
    $region3: #{tpu_custom_call.1} parent=1 // pred_check_branch
      %20 = sbr.rel (0) target = $region5
    $region4: #{tpu_custom_call.1} parent=1 // pred_region
      _
    $region5: #{tpu_custom_call.1} parent=1 // pred_fallthru
      _
    // Predicated region
    $region6: #{tpu_custom_call.1} parent=1 // pred_check
      _
    $region7: #{tpu_custom_call.1} parent=1 // pred_check_branch
      %22 = sbr.rel (0) target = $region9
    $region8: #{tpu_custom_call.1} parent=1 // pred_region
      _
    $region9: #{tpu_custom_call.1} parent=1 // pred_fallthru
      _
    // Predicated region
    $region10: #{tpu_custom_call.1} parent=1 // pred_check
      _
    $region11: #{tpu_custom_call.1} parent=1 // pred_check_branch
      %24 = sbr.rel (0) target = $region13
    $region12: #{tpu_custom_call.1} parent=1 // pred_region
      _
    $region13: #{tpu_custom_call.1} parent=1 // pred_fallthru
      _
    // Predicated region
    $region14: #{tpu_custom_call.1} parent=1 // pred_check
      _
    $region15: #{tpu_custom_call.1} parent=1 // pred_check_branch
      %26 = sbr.rel (0) target = $region17
    $region16: #{tpu_custom_call.1} parent=1 // pred_region
      _
    $region17: #{tpu_custom_call.1} parent=1 // pred_fallthru
      _
    // Predicated region
    $region18: #{tpu_custom_call.1} parent=1 // pred_check
      _
    $region19: #{tpu_custom_call.1} parent=1 // pred_check_branch
      %28 = sbr.rel (0) target = $region21
    $region20: #{tpu_custom_call.1} parent=1 // pred_region
      _
    $region21: #{tpu_custom_call.1} parent=1 // pred_fallthru
      _
    // Predicated region
    $region22: #{tpu_custom_call.1} parent=1 // pred_check
      _
    $region23: #{tpu_custom_call.1} parent=1 // pred_check_branch
      %30 = sbr.rel (0) target = $region25
    $region24: #{tpu_custom_call.1} parent=1 // pred_region
      _
    $region25: #{tpu_custom_call.1} parent=1 // pred_fallthru
      _
    // Predicated region
    $region26: #{tpu_custom_call.1} parent=1 // pred_check
      _
    $region27: #{tpu_custom_call.1} parent=1 // pred_check_branch
      %32 = sbr.rel (0) target = $region29
    $region28: #{tpu_custom_call.1} parent=1 // pred_region
      _
    $region29: #{tpu_custom_call.1} parent=1 // pred_fallthru
      _
    // Predicated region
    $region30: #{tpu_custom_call.1} parent=1 // pred_check
      _
    $region31: #{tpu_custom_call.1} parent=1 // pred_check_branch
      %34 = sbr.rel (0) target = $region33
    $region32: #{tpu_custom_call.1} parent=1 // pred_region
      _
    $region33: #{tpu_custom_call.1} parent=1 // pred_fallthru
      _
    // Predicated region
    $region34: #{tpu_custom_call.1} parent=1 // pred_check
      _
    $region35: #{tpu_custom_call.1} parent=1 // pred_check_branch
      %36 = sbr.rel (0) target = $region37
    $region36: #{tpu_custom_call.1} parent=1 // pred_region
      _
    $region37: #{tpu_custom_call.1} parent=1 // pred_fallthru
      _
    // Predicated region
    $region38: #{tpu_custom_call.1} parent=1 // pred_check
      _
    $region39: #{tpu_custom_call.1} parent=1 // pred_check_branch
      %38 = sbr.rel (0) target = $region41
    $region40: #{tpu_custom_call.1} parent=1 // pred_region
      _
    $region41: #{tpu_custom_call.1} parent=1 // pred_fallthru
      _
    // Predicated region
    $region42: #{tpu_custom_call.1} parent=1 // pred_check
      _
    $region43: #{tpu_custom_call.1} parent=1 // pred_check_branch
      %40 = sbr.rel (0) target = $region45
    $region44: #{tpu_custom_call.1} parent=1 // pred_region
      _
    $region45: #{tpu_custom_call.1} parent=1 // pred_fallthru
      _
    // Predicated region
    $region46: #{tpu_custom_call.1} parent=1 // pred_check
      _
    $region47: #{tpu_custom_call.1} parent=1 // pred_check_branch
      %42 = sbr.rel (0) target = $region49
    $region48: #{tpu_custom_call.1} parent=1 // pred_region
      _
    $region49: #{tpu_custom_call.1} parent=1 // pred_fallthru
      _
    // Predicated region
    $region50: #{tpu_custom_call.1} parent=1 // pred_check
      _
    $region51: #{tpu_custom_call.1} parent=1 // pred_check_branch
      %44 = sbr.rel (0) target = $region53
    $region52: #{tpu_custom_call.1} parent=1 // pred_region
      _
    $region53: #{tpu_custom_call.1} parent=1 // pred_fallthru
      _
    %v46 = vld [vmem:[%s0] sm:$0xf]
    %v47 = vld [vmem:[%s0 + $0x4] sm:$0xf]
    %v48 = vunpack.c.l.bf16 %v46
    %v49 = vunpack.c.l.bf16 %v47
    %v50 = vpack.c.bf16 %v49, %v48
    %v51 = vld [vmem:[%s1] sm:$0xf]
    %v52 = vld [vmem:[%s1 + $0x4] sm:$0xf]
    %v53 = vld [vmem:[%s1 + $0x8] sm:$0xf]
    %v54 = vld [vmem:[%s1 + $0xc] sm:$0xf]
    %v55 = vld [vmem:[%s2] sm:$0x1]
    %v57 = vperm.slane %v55, 0
    %v63 = vunpack.c.l.b16 %v51
    %v64 = vunpack.c.l.b16 %v52
    %v65 = vunpack.c.l.b16 %v53
    %v66 = vunpack.c.l.b16 %v54
    %v67 = vpack.c.b16 %v64, %v63
    %v68 = vpack.c.b16 %v66, %v65
    %vm71 = vcmask 261120
    %v73 = vsel %vm71, %v50, 0
    %75 = vmatpush.bf16.msra.mxu0 0
    %76 = vmatpush.bf16.msra.mxu0 0
    %77 = vmatpush.bf16.msra.mxu0 0
    %78 = vmatpush.bf16.msra.mxu0 0
    %79 = vmatpush.bf16.msra.mxu0 0
    %80 = vmatpush.bf16.msra.mxu0 0
    %81 = vmatpush.bf16.msra.mxu0 %v68
    %82 = vmatpush.bf16.msra.mxu0 %v67
    %83 = vmatmul.bf16.gmra.mxu0 %v73
    %v84 = vpop.f32.mrf.mxu0
    %v85 = vadd.f32 %v57, %v84
    %v86 = vpop.f32.mrf.mxu0
    %v87 = vadd.f32 %v57, %v86
    %88 = vdwg.mxu0
    %v89 = vpack.c.bf16 %v85, %v85
    %v90 = vpack.c.bf16 %v87, %v87
    %v92 = vunpack.c.l.b16 %v89
    %v93 = vpack.c.b16 %v92, %v92
    %94 = vrot.lane.b32.xlu0 %v93, 96
    %v95 = vpop.permute.xlu0 %94
    %v97 = vsel %vm71, %v89, 0
    %v100 = vsel %vm71, %v95, 0
    %102 = vmatpush.bf16.xpose.msra.mxu0 0
    %103 = vmatpush.bf16.xpose.msra.mxu0 0
    %104 = vmatpush.bf16.xpose.msra.mxu0 0
    %105 = vmatpush.bf16.xpose.msra.mxu0 0
    %106 = vmatpush.bf16.xpose.msra.mxu0 0
    %107 = vmatpush.bf16.xpose.msra.mxu0 0
    %108 = vmatpush.bf16.xpose.msra.mxu0 0
    %109 = vmatpush.bf16.xpose.msra.mxu0 %v100
    %110 = vmatmul.bf16.gmra.mxu0 %v97
    %v111 = vpop.f32.mrf.mxu0
    %v112 = vadd.f32 0.0, %v111
    %v113 = vpop.f32.mrf.mxu0
    %114 = vdwg.mxu0
    %v116 = vunpack.c.l.b16 %v90
    %v117 = vpack.c.b16 %v116, %v116
    %118 = vrot.lane.b32.xlu0 %v117, 96
    %v119 = vpop.permute.xlu0 %118
    %v121 = vsel %vm71, %v90, 0
    %v124 = vsel %vm71, %v119, 0
    %126 = vmatpush.bf16.xpose.msra.mxu0 0
    %127 = vmatpush.bf16.xpose.msra.mxu0 0
    %128 = vmatpush.bf16.xpose.msra.mxu0 0
    %129 = vmatpush.bf16.xpose.msra.mxu0 0
    %130 = vmatpush.bf16.xpose.msra.mxu0 0
    %131 = vmatpush.bf16.xpose.msra.mxu0 0
    %132 = vmatpush.bf16.xpose.msra.mxu0 0
    %133 = vmatpush.bf16.xpose.msra.mxu0 %v124
    %134 = vmatmul.bf16.gmra.mxu0 %v121
    %v135 = vpop.f32.mrf.mxu0
    %v136 = vadd.f32 0.0, %v135
    %v137 = vpop.f32.mrf.mxu0
    %138 = vdwg.mxu0
    %vm139 = vcmask 64512
    %v140 = vsel %vm139, %v112, -inf
    %141 = vmax.xlane.f32.xlu0 %v140
    %v142 = vpop.xlane.xlu0 %141
    %v143 = vsel %vm139, %v136, -inf
    %144 = vmax.xlane.f32.xlu0 %v143
    %v145 = vpop.xlane.xlu0 %144
    %v146 = vsub.f32 %v112, %v142
    %v147 = vsub.f32 %v136, %v145
    %v148 = vmul.f32 %v146, 1.442695
    %v149 = vpow.pop %v148
    %v150 = vmul.f32 %v147, 1.442695
    %v151 = vpow.pop %v150
    %v152 = vsel %vm139, %v149, 0.0
    %153 = vadd.xlane.f32.xlu0 %v152
    %v154 = vpop.xlane.xlu0 %153
    %v155 = vsel %vm139, %v151, 0.0
    %156 = vadd.xlane.f32.xlu0 %v155
    %v157 = vpop.xlane.xlu0 %156
    %v158 = vrcp.pop %v154
    %v159 = vrcp.pop %v157
    %v160 = vpack.c.bf16 %v149, %v149
    %v161 = vpack.c.bf16 %v151, %v151
    %162 = vrot.lane.b32.xlu0 %v93, 64
    %v163 = vpop.permute.xlu0 %162
    %v165 = vsel %vm139, %v160, 0
    %vm167 = vcmask 1043456
    %v169 = vsel %vm167, %v163, 0
    %171 = vmatpush.bf16.msra.mxu0 0
    %172 = vmatpush.bf16.msra.mxu0 0
    %173 = vmatpush.bf16.msra.mxu0 0
    %174 = vmatpush.bf16.msra.mxu0 0
    %175 = vmatpush.bf16.msra.mxu0 0
    %176 = vmatpush.bf16.msra.mxu0 0
    %177 = vmatpush.bf16.msra.mxu0 0
    %178 = vmatpush.bf16.msra.mxu0 %v169
    %179 = vmatmul.bf16.gmra.mxu0 %v165
    %v180 = vpop.f32.mrf.mxu0
    %v181 = vadd.f32 0.0, %v180
    %v182 = vpop.f32.mrf.mxu0
    %183 = vdwg.mxu0
    %184 = vrot.lane.b32.xlu0 %v117, 64
    %v185 = vpop.permute.xlu0 %184
    %v187 = vsel %vm139, %v161, 0
    %v190 = vsel %vm167, %v185, 0
    %192 = vmatpush.bf16.msra.mxu0 0
    %193 = vmatpush.bf16.msra.mxu0 0
    %194 = vmatpush.bf16.msra.mxu0 0
    %195 = vmatpush.bf16.msra.mxu0 0
    %196 = vmatpush.bf16.msra.mxu0 0
    %197 = vmatpush.bf16.msra.mxu0 0
    %198 = vmatpush.bf16.msra.mxu0 0
    %199 = vmatpush.bf16.msra.mxu0 %v190
    %200 = vmatmul.bf16.gmra.mxu0 %v187
    %v201 = vpop.f32.mrf.mxu0
    %v202 = vadd.f32 0.0, %v201
    %v203 = vpop.f32.mrf.mxu0
    %204 = vdwg.mxu0
    %v205 = vmul.f32 %v181, %v158
    %v206 = vmul.f32 %v202, %v159
    %v207 = vpack.c.bf16 %v206, %v205
    %v208 = vld [vmem:[%s3] sm:$0xf]
    %v209 = vld [vmem:[%s3 + $0x4] sm:$0xf]
    %v210 = vld [vmem:[%s3 + $0x8] sm:$0xf]
    %v211 = vld [vmem:[%s3 + $0xc] sm:$0xf]
    %v212 = vld [vmem:[%s4] sm:$0x1]
    %v214 = vperm.slane %v212, 0
    %v220 = vunpack.c.l.b16 %v208
    %v221 = vunpack.c.l.b16 %v209
    %v222 = vunpack.c.l.b16 %v210
    %v223 = vunpack.c.l.b16 %v211
    %v224 = vpack.c.b16 %v221, %v220
    %v225 = vpack.c.b16 %v223, %v222
    %v229 = vsel %vm71, %v207, 0
    %231 = vmatpush.bf16.msra.mxu0 0
    %232 = vmatpush.bf16.msra.mxu0 0
    %233 = vmatpush.bf16.msra.mxu0 0
    %234 = vmatpush.bf16.msra.mxu0 0
    %235 = vmatpush.bf16.msra.mxu0 0
    %236 = vmatpush.bf16.msra.mxu0 0
    %237 = vmatpush.bf16.msra.mxu0 %v225
    %238 = vmatpush.bf16.msra.mxu0 %v224
    %239 = vmatmul.bf16.gmra.mxu0 %v229
    %v240 = vpop.f32.mrf.mxu0
    %v241 = vadd.f32 %v214, %v240
    %v242 = vpop.f32.mrf.mxu0
    %v243 = vadd.f32 %v214, %v242
    %244 = vdwg.mxu0
    %v245 = vadd.f32 %v48, %v241
    %v246 = vadd.f32 %v49, %v243
    %v247 = vld [vmem:[%s9] sm:$0x1]
    %v248 = vld [vmem:[%s10] sm:$0x1]
    %v249 = vsel %vm71, %v245, 0.0
    %250 = vadd.xlane.f32.xlu0 %v249
    %v251 = vpop.xlane.xlu0 %250
    %v252 = vsel %vm71, %v246, 0.0
    %253 = vadd.xlane.f32.xlu0 %v252
    %v254 = vpop.xlane.xlu0 %253
    %v255 = vrcp.pop 32.0
    %v256 = vmul.f32 32.0, %v255
    %v257 = vsub.f32 1.0, %v256
    %v258 = vmul.f32 %v255, %v257
    %v259 = vadd.f32 %v255, %v258
    %vm260 = vweird.f32 %v255
    %v261 = vsel %vm260, %v255, %v259
    %v262 = vmul.f32 %v251, %v261
    %v263 = vmul.f32 %v254, %v261
    %v264 = vsub.f32 %v245, %v262
    %v265 = vsub.f32 %v246, %v263
    %v266 = vmul.f32 %v264, %v264
    %v267 = vmul.f32 %v265, %v265
    %v268 = vsel %vm71, %v266, 0.0
    %269 = vadd.xlane.f32.xlu0 %v268
    %v270 = vpop.xlane.xlu0 %269
    %v271 = vsel %vm71, %v267, 0.0
    %272 = vadd.xlane.f32.xlu0 %v271
    %v273 = vpop.xlane.xlu0 %272
    %v274 = vmul.f32 %v270, %v261
    %v275 = vmul.f32 %v273, %v261
    %v276 = vadd.f32 %v274, 1e-05
    %v277 = vadd.f32 %v275, 1e-05
    %v278 = vrsqrt.pop %v276
    %v279 = vmul.f32 %v278, %v276
    %v280 = vmul.f32 %v279, %v278
    %v281 = vmul.f32 0.5, %v280
    %v282 = vsub.f32 1.5, %v281
    %v283 = vmul.f32 %v278, %v282
    %vm284 = vweird.f32 %v276
    %vm285 = vweird.f32 %v278
    %vm286 = vmor %vm284, %vm285
    %v287 = vsel %vm286, %v278, %v283
    %v288 = vrsqrt.pop %v277
    %v289 = vmul.f32 %v288, %v277
    %v290 = vmul.f32 %v289, %v288
    %v291 = vmul.f32 0.5, %v290
    %v292 = vsub.f32 1.5, %v291
    %v293 = vmul.f32 %v288, %v292
    %vm294 = vweird.f32 %v277
    %vm295 = vweird.f32 %v288
    %vm296 = vmor %vm294, %vm295
    %v297 = vsel %vm296, %v288, %v293
    %v298 = vmul.f32 %v264, %v287
    %v299 = vmul.f32 %v265, %v297
    %v301 = vperm.slane %v247, 0
    %v303 = vmul.f32 %v298, %v301
    %v304 = vmul.f32 %v299, %v301
    %v306 = vperm.slane %v248, 0
    %v308 = vadd.f32 %v303, %v306
    %v309 = vadd.f32 %v304, %v306
    %v310 = vpack.c.bf16 %v309, %v308
    %v311 = vld [vmem:[%s5] sm:$0xf]
    %v312 = vld [vmem:[%s5 + $0x4] sm:$0xf]
    %v313 = vld [vmem:[%s5 + $0x8] sm:$0xf]
    %v314 = vld [vmem:[%s5 + $0xc] sm:$0xf]
    %v315 = vld [vmem:[%s6] sm:$0x1]
    %v317 = vperm.slane %v315, 0
    %v323 = vunpack.c.l.b16 %v311
    %v324 = vunpack.c.l.b16 %v312
    %v325 = vunpack.c.l.b16 %v313
    %v326 = vunpack.c.l.b16 %v314
    %v327 = vpack.c.b16 %v324, %v323
    %v328 = vpack.c.b16 %v326, %v325
    %v332 = vsel %vm71, %v310, 0
    %334 = vmatpush.bf16.msra.mxu0 0
    %335 = vmatpush.bf16.msra.mxu0 0
    %336 = vmatpush.bf16.msra.mxu0 0
    %337 = vmatpush.bf16.msra.mxu0 0
    %338 = vmatpush.bf16.msra.mxu0 0
    %339 = vmatpush.bf16.msra.mxu0 0
    %340 = vmatpush.bf16.msra.mxu0 %v328
    %341 = vmatpush.bf16.msra.mxu0 %v327
    %342 = vmatmul.bf16.gmra.mxu0 %v332
    %v343 = vpop.f32.mrf.mxu0
    %v344 = vadd.f32 %v317, %v343
    %v345 = vpop.f32.mrf.mxu0
    %v346 = vadd.f32 %v317, %v345
    %347 = vdwg.mxu0
    %v348 = vmax.f32 %v344, 0.0
    %v349 = vmax.f32 %v346, 0.0
    %v350 = vpack.c.bf16 %v349, %v348
    %v351 = vld [vmem:[%s7] sm:$0xf]
    %v352 = vld [vmem:[%s7 + $0x4] sm:$0xf]
    %v353 = vld [vmem:[%s7 + $0x8] sm:$0xf]
    %v354 = vld [vmem:[%s7 + $0xc] sm:$0xf]
    %v355 = vld [vmem:[%s7 + $0x10] sm:$0xf]
    %v356 = vld [vmem:[%s7 + $0x14] sm:$0xf]
    %v357 = vld [vmem:[%s7 + $0x18] sm:$0xf]
    %v358 = vld [vmem:[%s7 + $0x1c] sm:$0xf]
    %v359 = vld [vmem:[%s7 + $0x20] sm:$0xf]
    %v360 = vld [vmem:[%s7 + $0x24] sm:$0xf]
    %v361 = vld [vmem:[%s7 + $0x28] sm:$0xf]
    %v362 = vld [vmem:[%s7 + $0x2c] sm:$0xf]
    %v363 = vld [vmem:[%s7 + $0x30] sm:$0xf]
    %v364 = vld [vmem:[%s7 + $0x34] sm:$0xf]
    %v365 = vld [vmem:[%s7 + $0x38] sm:$0xf]
    %v366 = vld [vmem:[%s7 + $0x3c] sm:$0xf]
    %v367 = vld [vmem:[%s8] sm:$0x1]
    %v369 = vperm.slane %v367, 0
    %v387 = vunpack.c.l.b16 %v351
    %v388 = vunpack.c.l.b16 %v352
    %v389 = vunpack.c.l.b16 %v353
    %v390 = vunpack.c.l.b16 %v354
    %v391 = vunpack.c.l.b16 %v355
    %v392 = vunpack.c.l.b16 %v356
    %v393 = vunpack.c.l.b16 %v357
    %v394 = vunpack.c.l.b16 %v358
    %v395 = vunpack.c.l.b16 %v359
    %v396 = vunpack.c.l.b16 %v360
    %v397 = vunpack.c.l.b16 %v361
    %v398 = vunpack.c.l.b16 %v362
    %v399 = vunpack.c.l.b16 %v363
    %v400 = vunpack.c.l.b16 %v364
    %v401 = vunpack.c.l.b16 %v365
    %v402 = vunpack.c.l.b16 %v366
    %v403 = vpack.c.b16 %v388, %v387
    %v404 = vpack.c.b16 %v390, %v389
    %v405 = vpack.c.b16 %v392, %v391
    %v406 = vpack.c.b16 %v394, %v393
    %v407 = vpack.c.b16 %v396, %v395
    %v408 = vpack.c.b16 %v398, %v397
    %v409 = vpack.c.b16 %v400, %v399
    %v410 = vpack.c.b16 %v402, %v401
    %419 = vmatpush.bf16.msra.mxu0 %v410
    %420 = vmatpush.bf16.msra.mxu0 %v409
    %421 = vmatpush.bf16.msra.mxu0 %v408
    %422 = vmatpush.bf16.msra.mxu0 %v407
    %423 = vmatpush.bf16.msra.mxu0 %v406
    %424 = vmatpush.bf16.msra.mxu0 %v405
    %425 = vmatpush.bf16.msra.mxu0 %v404
    %426 = vmatpush.bf16.msra.mxu0 %v403
    %427 = vmatmul.bf16.gmra.mxu0 %v350
    %v428 = vpop.f32.mrf.mxu0
    %v429 = vadd.f32 %v369, %v428
    %v430 = vpop.f32.mrf.mxu0
    %v431 = vadd.f32 %v369, %v430
    %432 = vdwg.mxu0
    %v433 = vadd.f32 %v308, %v429
    %v434 = vadd.f32 %v309, %v431
    %v435 = vld [vmem:[%s11] sm:$0x1]
    %v436 = vld [vmem:[%s12] sm:$0x1]
    %v437 = vsel %vm71, %v433, 0.0
    %438 = vadd.xlane.f32.xlu0 %v437
    %v439 = vpop.xlane.xlu0 %438
    %v440 = vsel %vm71, %v434, 0.0
    %441 = vadd.xlane.f32.xlu0 %v440
    %v442 = vpop.xlane.xlu0 %441
    %v443 = vmul.f32 %v439, %v261
    %v444 = vmul.f32 %v442, %v261
    %v445 = vsub.f32 %v433, %v443
    %v446 = vsub.f32 %v434, %v444
    %v447 = vmul.f32 %v445, %v445
    %v448 = vmul.f32 %v446, %v446
    %v449 = vsel %vm71, %v447, 0.0
    %450 = vadd.xlane.f32.xlu0 %v449
    %v451 = vpop.xlane.xlu0 %450
    %v452 = vsel %vm71, %v448, 0.0
    %453 = vadd.xlane.f32.xlu0 %v452
    %v454 = vpop.xlane.xlu0 %453
    %v455 = vmul.f32 %v451, %v261
    %v456 = vmul.f32 %v454, %v261
    %v457 = vadd.f32 %v455, 1e-05
    %v458 = vadd.f32 %v456, 1e-05
    %v459 = vrsqrt.pop %v457
    %v460 = vmul.f32 %v459, %v457
    %v461 = vmul.f32 %v460, %v459
    %v462 = vmul.f32 0.5, %v461
    %v463 = vsub.f32 1.5, %v462
    %v464 = vmul.f32 %v459, %v463
    %vm465 = vweird.f32 %v457
    %vm466 = vweird.f32 %v459
    %vm467 = vmor %vm465, %vm466
    %v468 = vsel %vm467, %v459, %v464
    %v469 = vrsqrt.pop %v458
    %v470 = vmul.f32 %v469, %v458
    %v471 = vmul.f32 %v470, %v469
    %v472 = vmul.f32 0.5, %v471
    %v473 = vsub.f32 1.5, %v472
    %v474 = vmul.f32 %v469, %v473
    %vm475 = vweird.f32 %v458
    %vm476 = vweird.f32 %v469
    %vm477 = vmor %vm475, %vm476
    %v478 = vsel %vm477, %v469, %v474
    %v479 = vmul.f32 %v445, %v468
    %v480 = vmul.f32 %v446, %v478
    %v482 = vperm.slane %v435, 0
    %v484 = vmul.f32 %v479, %v482
    %v485 = vmul.f32 %v480, %v482
    %v487 = vperm.slane %v436, 0
    %v489 = vadd.f32 %v484, %v487
    %v490 = vadd.f32 %v485, %v487
    %491 = vst.msk [vmem:[#allocation2] sm:$0xff] %vm71, %v489
    %492 = vst.msk [vmem:[#allocation2 + $0x8] sm:$0xff] %vm71, %v490
    // Predicated region
    $region54: #{tpu_custom_call.1} parent=1 // pred_check
      _
    $region55: #{tpu_custom_call.1} parent=1 // pred_check_branch
      %494 = sbr.rel (0) target = $region57
    $region56: #{tpu_custom_call.1} parent=1 // pred_region
      %496 = vsyncadd [#allocation3], 0
      %s497 = sshll.u32 [#allocation2], 4
      %s498 = int_to_ptr.vmem [resolvable:$true] %s497
      %s499 = sshll.u32 %s13, 4
      %s500 = int_to_ptr.hbm [resolvable:$true] %s499
      %505 = dma.vmem_to_hbm [thread:$0]  %s498, 256, %s500, [#allocation3], 128, 128, 8
    $region57: #{tpu_custom_call.1} parent=1 // pred_fallthru
      _
    // Predicated region
    $region58: #{tpu_custom_call.1} parent=1 // pred_check
      _
    $region59: #{tpu_custom_call.1} parent=1 // pred_check_branch
      %507 = sbr.rel (0) target = $region61
    $region60: #{tpu_custom_call.1} parent=1 // pred_region
      %509 = dma.done [#allocation3], 256
    $region61: #{tpu_custom_call.1} parent=1 // pred_fallthru
      _
    %510 = vsyncpa [#allocation3], 1

</llo_original>
